<compile_context>
chip_gen: v5e
topology: v5e:2x2
jax: 0.10.0
libtpu: 0.0.40
codegen_flags: <defaults>
</compile_context>

<pallas_src>
import functools
import math

import jax
import jax.numpy as jnp
from jax import lax
from jax.experimental import pallas as pl
from jax.experimental.pallas import tpu as pltpu


# ---------------------------------------------------------------------------
# Fused decoder kernel: one batch element per grid step, everything in VMEM.
# In-kernel layout: channels on sublanes, sequence on the 128-lane axis.
# ---------------------------------------------------------------------------
def _decoder_kernel(x_ref, w1_ref, b1_ref, rw3_ref, rw1_ref, wt1_ref, bt1_ref,
                    w2e_ref, w2o_ref, bt2_ref, out_ref, *,
                    num_res_layers, num_hiddens, num_res_hiddens, valid_len,
                    use_bf16):
    H = num_hiddens
    Hr = num_res_hiddens
    Hh = H // 2
    Lp = x_ref.shape[-1]                       # padded (lane-dense) length

    f32 = jnp.float32
    cdt = jnp.bfloat16 if use_bf16 else jnp.float32

    # Lane index, hoisted once; reused by every shift and by the padding mask.
    lane = lax.broadcasted_iota(jnp.int32, (1, Lp), 1)

    def shift_right(v):
        # y[:, l] = v[:, l-1]; y[:, 0] = 0.  XLU roll + lane mask (no copies).
        return jnp.where(lane == 0, 0.0, pltpu.roll(v, 1, axis=1))

    def shift_left(v):
        # y[:, l] = v[:, l+1]; y[:, Lp-1] = 0.  (roll by Lp-1 == roll by -1)
        return jnp.where(lane == Lp - 1, 0.0, pltpu.roll(v, Lp - 1, axis=1))

    if valid_len < Lp:
        # Re-zero padded columns so the next conv's right-neighbour tap sees the
        # same zero padding as the unpadded module would.
        valid = lane < valid_len

        def mask(v):
            return jnp.where(valid, v, 0.0)
    else:
        def mask(v):
            return v

    def dot(w, v):
        # MXU matmul; bf16 operands (optional) with f32 accumulation.
        return jnp.dot(w, v.astype(cdt), preferred_element_type=f32)

    def conv3(w_stacked, v, cout):
        # k=3 / s=1 / p=1 conv as ONE (3*Cout, Cin) @ (Cin, L) matmul.
        # The sequence shifts commute with the channel contraction, so they are
        # applied to the (Cout, L) output row-blocks instead of to the input.
        y = dot(w_stacked, v)                                   # (3*Cout, Lp)
        return (shift_right(y[0:cout])
                + y[cout:2 * cout]
                + shift_left(y[2 * cout:3 * cout]))

    x = x_ref[0].astype(f32)                                    # (Cin, Lp)

    # ---- conv_1 (k=3, s=1, p=1) + bias -------------------------------------
    h = mask(conv3(w1_ref[...], x, H) + b1_ref[...])            # (H, Lp)

    # ---- residual stack:  h += conv1x1(relu(conv3x3(relu(h)))) -------------
    for i in range(num_res_layers):
        r = jnp.maximum(h, 0.0)
        mid = jnp.maximum(conv3(rw3_ref[i], r, Hr), 0.0)        # (Hr, Lp), no bias
        h = mask(h + dot(rw1_ref[i], mid))                      # 1x1 conv, no bias
    h = jnp.maximum(h, 0.0)                                     # stack's final ReLU

    # ---- conv_trans_1 (k=4, s=2, p=1) + ReLU, polyphase (even/odd) ----------
    # One (4*Hh, H) @ (H, L) matmul; row-block k = W_k @ h.
    #   out[2j]   = W1 @ h[j] + W3 @ h[j-1] + b
    #   out[2j+1] = W0 @ h[j+1] + W2 @ h[j] + b
    y = dot(wt1_ref[...], h)                                    # (4*Hh, Lp)
    bt1 = bt1_ref[...]                                          # (Hh, 1)
    ye = jnp.maximum(y[Hh:2 * Hh] + shift_right(y[3 * Hh:4 * Hh]) + bt1, 0.0)
    yo = jnp.maximum(shift_left(y[0:Hh]) + y[2 * Hh:3 * Hh] + bt1, 0.0)
    ye = mask(ye)
    yo = mask(yo)

    # ---- conv_trans_2 (k=4, s=2, p=1), Cout=1, 4 interleaved output phases --
    # Taps computed on UNSHIFTED ye/yo (reductions commute with shifts):
    #   s[0]=w1.ye  s[1]=w2.ye+w0.yo  s[2]=w3.ye+w1.yo  s[3]=w2.yo
    #   s[4]=w0.ye (to be left-shifted)  s[5]=w3.yo (to be right-shifted)
    s = dot(w2e_ref[...], ye) + dot(w2o_ref[...], yo)           # (8, Lp)
    rid = lax.broadcasted_iota(jnp.int32, (4, Lp), 0)
    phases = (s[0:4]
              + jnp.where(rid == 0, shift_right(s[5:6]), 0.0)   # p0 += SR(w3.yo)
              + jnp.where(rid == 3, shift_left(s[4:5]), 0.0)    # p3 += SL(w0.ye)
              + bt2_ref[...])
    out_ref[0] = phases                                         # (4, Lp) phase rows


# ---------------------------------------------------------------------------
# Wrapper: weight re-layout (tap-stacked), lane padding, one pallas_call,
# phase interleave + squeeze.
# ---------------------------------------------------------------------------
def decoder_forward(params, inputs, *, use_bf16_matmul=True):
    """inputs: (B, in_channels, L) PyTorch NCL layout. Returns squeeze((B, 4*L))."""
    x = jnp.asarray(inputs, jnp.float32)
    B, Cin, L = x.shape
    H = params["w1"].shape[0]
    Hh = H // 2
    nres = len(params["res"])
    Hr = params["res"][0][0].shape[0]
    assert nres >= 1 and H % 2 == 0

    # Lane-dense sequence length (multiple of 128); padded cols are re-zeroed
    # inside the kernel so boundary semantics are unchanged.
    Lp = ((L + 127) // 128) * 128
    if Lp != L:
        x = jnp.pad(x, ((0, 0), (0, 0), (0, Lp - L)))

    f32 = jnp.float32
    wdt = jnp.bfloat16 if use_bf16_matmul else jnp.float32

    # --- tap-stacked weight layouts: each conv becomes a single matmul -------
    w1s = jnp.transpose(params["w1"], (2, 0, 1)).reshape(3 * H, Cin).astype(wdt)
    b1 = params["b1"].reshape(H, 1).astype(f32)
    rw3s = jnp.stack([jnp.transpose(w3, (2, 0, 1)).reshape(3 * Hr, H)
                      for w3, _ in params["res"]]).astype(wdt)   # (nres, 3Hr, H)
    rw1 = jnp.stack([w11[:, :, 0]
                     for _, w11 in params["res"]]).astype(wdt)   # (nres, H, Hr)
    # ConvTranspose1d weights are (Cin, Cout, K) in PyTorch.
    wt1s = jnp.transpose(params["wt1"], (2, 1, 0)).reshape(4 * Hh, H).astype(wdt)
    bt1 = params["bt1"].reshape(Hh, 1).astype(f32)

    w2 = params["wt2"][:, 0, :]                                  # (Hh, 4), w2[:,k]=w_k
    zer = jnp.zeros((Hh,), f32)
    # Rows of s (see kernel):   0: w1.ye   1: w2.ye+w0.yo   2: w3.ye+w1.yo
    #                           3: w2.yo   4: w0.ye         5: w3.yo   6,7: pad
    w2e = jnp.stack([w2[:, 1], w2[:, 2], w2[:, 3], zer,
                     w2[:, 0], zer, zer, zer]).astype(wdt)       # (8, Hh) vs ye
    w2o = jnp.stack([zer, w2[:, 0], w2[:, 1], w2[:, 2],
                     zer, w2[:, 3], zer, zer]).astype(wdt)       # (8, Hh) vs yo
    bt2 = params["bt2"].reshape(1, 1).astype(f32)

    kernel = functools.partial(
        _decoder_kernel, num_res_layers=nres, num_hiddens=H,
        num_res_hiddens=Hr, valid_len=L, use_bf16=use_bf16_matmul)

    macs = B * Lp * (3 * H * Cin + nres * (3 * Hr * H + H * Hr)
                     + 4 * Hh * H + 8 * Hh)
    weight_arrays = (w1s, b1, rw3s, rw1, wt1s, bt1, w2e, w2o, bt2)
    bytes_accessed = (x.size * 4 + B * 4 * Lp * 4
                      + sum(int(a.size) * a.dtype.itemsize for a in weight_arrays))

    out = pl.pallas_call(
        kernel,
        out_shape=jax.ShapeDtypeStruct((B, 4, Lp), jnp.float32),
        grid=(B,),
        in_specs=[
            pl.BlockSpec((1, Cin, Lp), lambda b: (b, 0, 0)),          # x
            pl.BlockSpec((3 * H, Cin), lambda b: (0, 0)),             # conv_1 taps
            pl.BlockSpec((H, 1), lambda b: (0, 0)),                   # conv_1 bias
            pl.BlockSpec((nres, 3 * Hr, H), lambda b: (0, 0, 0)),     # res 3x3 taps
            pl.BlockSpec((nres, H, Hr), lambda b: (0, 0, 0)),         # res 1x1
            pl.BlockSpec((4 * Hh, H), lambda b: (0, 0)),              # conv_t1 taps
            pl.BlockSpec((Hh, 1), lambda b: (0, 0)),                  # conv_t1 bias
            pl.BlockSpec((8, Hh), lambda b: (0, 0)),                  # conv_t2 (vs ye)
            pl.BlockSpec((8, Hh), lambda b: (0, 0)),                  # conv_t2 (vs yo)
            pl.BlockSpec((1, 1), lambda b: (0, 0)),                   # conv_t2 bias
        ],
        out_specs=pl.BlockSpec((1, 4, Lp), lambda b: (b, 0, 0)),
        compiler_params=pltpu.CompilerParams(
            dimension_semantics=("parallel",)),
        cost_estimate=pl.CostEstimate(flops=int(2 * macs), transcendentals=0,
                                      bytes_accessed=int(bytes_accessed)),
    )(x, w1s, b1, rw3s, rw1, wt1s, bt1, w2e, w2o, bt2)

    # Interleave output phases: z[b, 4q + r] = out[b, r, q]; then torch.squeeze.
    z = jnp.transpose(out, (0, 2, 1)).reshape(B, 4 * Lp)[:, :4 * L]
    return jnp.squeeze(z)


# ---------------------------------------------------------------------------
# Deterministic parameter init (PyTorch Conv layouts; uniform like Conv default).
# ---------------------------------------------------------------------------
def init_decoder_params(key, in_channels, num_hiddens, num_residual_layers,
                        num_residual_hiddens):
    H, Hr, Hh = num_hiddens, num_residual_hiddens, num_hiddens // 2
    keys = jax.random.split(key, 6 + 2 * num_residual_layers)
    it = iter(keys)

    def u(k, shape, fan):
        b = 1.0 / math.sqrt(fan)
        return jax.random.uniform(k, shape, jnp.float32, -b, b)

    p = {}
    p["w1"] = u(next(it), (H, in_channels, 3), in_channels * 3)   # Conv1d (Cout,Cin,K)
    p["b1"] = u(next(it), (H,), in_channels * 3)
    p["res"] = []
    for _ in range(num_residual_layers):
        w3 = u(next(it), (Hr, H, 3), H * 3)                       # bias=False
        w11 = u(next(it), (H, Hr, 1), Hr)                         # bias=False
        p["res"].append((w3, w11))
    p["wt1"] = u(next(it), (H, Hh, 4), H * 4)                     # ConvT (Cin,Cout,K)
    p["bt1"] = u(next(it), (Hh,), H * 4)
    p["wt2"] = u(next(it), (Hh, 1, 4), Hh * 4)
    p["bt2"] = u(next(it), (1,), Hh * 4)
    return p


# ---------------------------------------------------------------------------
# Pure-JAX reference (lax convs, HIGHEST precision) for correctness checks.
# ---------------------------------------------------------------------------
def _decoder_reference(params, inputs):
    x = inputs.astype(jnp.float32)
    prec = jax.lax.Precision.HIGHEST

    def conv1d(x, w, b, stride, padding):
        out = jax.lax.conv_general_dilated(
            x, w, window_strides=(stride,), padding=[(padding, padding)],
            dimension_numbers=("NCH", "OIH", "NCH"), precision=prec)
        return out if b is None else out + b[None, :, None]

    def conv_t1d(x, w, b, stride, padding):
        K = w.shape[-1]
        w_oih = jnp.transpose(jnp.flip(w, axis=-1), (1, 0, 2))
        out = jax.lax.conv_general_dilated(
            x, w_oih, window_strides=(1,),
            padding=[(K - 1 - padding, K - 1 - padding)],
            lhs_dilation=(stride,), dimension_numbers=("NCH", "OIH", "NCH"),
            precision=prec)
        return out if b is None else out + b[None, :, None]

    h = conv1d(x, params["w1"], params["b1"], 1, 1)
    for w3, w11 in params["res"]:
        r = jax.nn.relu(h)
        mid = jax.nn.relu(conv1d(r, w3, None, 1, 1))
        h = h + conv1d(mid, w11, None, 1, 0)
    h = jax.nn.relu(h)
    y = jax.nn.relu(conv_t1d(h, params["wt1"], params["bt1"], 2, 1))
    z = conv_t1d(y, params["wt2"], params["bt2"], 2, 1)
    return jnp.squeeze(z)


if __name__ == "__main__":
    B = 2
    in_channels = 16            # e.g. VQ embedding_dim
    num_hiddens = 32
    num_residual_layers = 2
    num_residual_hiddens = 8

    key = jax.random.PRNGKey(0)
    kp, kx1, kx2 = jax.random.split(key, 3)
    params = init_decoder_params(kp, in_channels, num_hiddens,
                                 num_residual_layers, num_residual_hiddens)

    # Case 1: L not a multiple of 128 -> exercises lane padding + re-zero masks.
    L1 = 40
    x1 = jax.random.normal(kx1, (B, in_channels, L1), dtype=jnp.float32)
    # Case 2: lane-dense L (no padding path).
    L2 = 128
    x2 = jax.random.normal(kx2, (B, in_channels, L2), dtype=jnp.float32)

    fwd_f32 = jax.jit(functools.partial(decoder_forward, use_bf16_matmul=False))
    fwd_bf16 = jax.jit(decoder_forward)     # default: bf16 MXU operands, f32 accum

    # --- f32 path, tight tolerance (catches any layout / phase bug) ----------
    out1 = jax.block_until_ready(fwd_f32(params, x1))
    ref1 = jax.block_until_ready(_decoder_reference(params, x1))
    assert out1.shape == (B, 4 * L1), out1.shape
    err1 = float(jnp.max(jnp.abs(out1 - ref1)))
    assert err1 < 1e-3, f"f32 path max abs err vs reference: {err1}"

    # --- bf16 path (default), looser tolerance --------------------------------
    out2 = jax.block_until_ready(fwd_bf16(params, x2))
    ref2 = jax.block_until_ready(_decoder_reference(params, x2))
    assert out2.shape == (B, 4 * L2), out2.shape
    err2 = float(jnp.max(jnp.abs(out2 - ref2)))
    assert err2 < 5e-2, f"bf16 path max abs err vs reference: {err2}"

    out3 = jax.block_until_ready(fwd_bf16(params, x1))
    assert out3.shape == (B, 4 * L1), out3.shape

    assert bool(jnp.isfinite(out1).all()) and bool(jnp.isfinite(out2).all())
    print("KERNEL_OK")
</pallas_src>

<mosaic_0001>
module attributes {stable_mosaic.version = 11 : i64} {
  func.func @_decoder_kernel(%arg0: i32, %arg1: memref<1x16x128xf32, #tpu.memory_space<vmem>>, %arg2: memref<96x16xf32, #tpu.memory_space<vmem>>, %arg3: memref<32x1xf32, #tpu.memory_space<vmem>>, %arg4: memref<2x24x32xf32, #tpu.memory_space<vmem>>, %arg5: memref<2x32x8xf32, #tpu.memory_space<vmem>>, %arg6: memref<64x32xf32, #tpu.memory_space<vmem>>, %arg7: memref<16x1xf32, #tpu.memory_space<vmem>>, %arg8: memref<8x16xf32, #tpu.memory_space<vmem>>, %arg9: memref<8x16xf32, #tpu.memory_space<vmem>>, %arg10: memref<1x1xf32, #tpu.memory_space<vmem>>, %arg11: memref<1x4x128xf32, #tpu.memory_space<vmem>>) attributes {dimension_semantics = [#tpu.dimension_semantics<parallel>], iteration_bounds = array<i64: 2>, scalar_prefetch = 0 : i64, scratch_operands = 0 : i64, tpu.core_type = #tpu.core_type<tc>, window_params = [{transform_indices = @transform_0, window_bounds = array<i64: 1, 16, 128>}, {pipeline_mode = #tpu.pipeline_mode<synchronous>, transform_indices = @transform_1, window_bounds = array<i64: 96, 16>}, {pipeline_mode = #tpu.pipeline_mode<synchronous>, transform_indices = @transform_2, window_bounds = array<i64: 32, 1>}, {pipeline_mode = #tpu.pipeline_mode<synchronous>, transform_indices = @transform_3, window_bounds = array<i64: 2, 24, 32>}, {pipeline_mode = #tpu.pipeline_mode<synchronous>, transform_indices = @transform_4, window_bounds = array<i64: 2, 32, 8>}, {pipeline_mode = #tpu.pipeline_mode<synchronous>, transform_indices = @transform_5, window_bounds = array<i64: 64, 32>}, {pipeline_mode = #tpu.pipeline_mode<synchronous>, transform_indices = @transform_6, window_bounds = array<i64: 16, 1>}, {pipeline_mode = #tpu.pipeline_mode<synchronous>, transform_indices = @transform_7, window_bounds = array<i64: 8, 16>}, {pipeline_mode = #tpu.pipeline_mode<synchronous>, transform_indices = @transform_8, window_bounds = array<i64: 8, 16>}, {pipeline_mode = #tpu.pipeline_mode<synchronous>, transform_indices = @transform_9, window_bounds = array<i64: 1, 1>}, {transform_indices = @transform_10, window_bounds = array<i64: 1, 4, 128>}]} {
    %0 = tpu.iota {dimensions = array<i32: 1>} : vector<1x128xi32>
    %c40_i32 = arith.constant 40 : i32
    %1 = vector.broadcast %c40_i32 : i32 to vector<1x128xi32>
    %2 = arith.cmpi slt, %0, %1 : vector<1x128xi32>
    %c0 = arith.constant 0 : index
    %c0_0 = arith.constant 0 : index
    %c0_1 = arith.constant 0 : index
    %3 = vector.load %arg1[%c0, %c0_0, %c0_1] : memref<1x16x128xf32, #tpu.memory_space<vmem>>, vector<1x16x128xf32>
    %4 = vector.shape_cast %3 : vector<1x16x128xf32> to vector<16x128xf32>
    %c0_2 = arith.constant 0 : index
    %c0_3 = arith.constant 0 : index
    %5 = vector.load %arg2[%c0_2, %c0_3] : memref<96x16xf32, #tpu.memory_space<vmem>>, vector<96x16xf32>
    %cst = arith.constant dense<0.000000e+00> : vector<96x128xf32>
    %6 = tpu.matmul %5, %4, %cst {dimension_numbers = #tpu.dot_dimension_numbers<[1], [0], [0], [1], [0, 0, 1, 1], [], []>} : vector<96x16xf32>, vector<16x128xf32>, vector<96x128xf32> -> vector<96x128xf32>
    %7 = vector.extract_strided_slice %6 {offsets = [0, 0], sizes = [32, 128], strides = [1, 1]} : vector<96x128xf32> to vector<32x128xf32>
    %c0_i32 = arith.constant 0 : i32
    %8 = vector.broadcast %c0_i32 : i32 to vector<1x128xi32>
    %9 = arith.cmpi eq, %0, %8 : vector<1x128xi32>
    %c1_i32 = arith.constant 1 : i32
    %10 = tpu.dynamic_rotate %7 by %c1_i32 dim 1 : vector<32x128xf32>, i32 -> vector<32x128xf32>
    %cst_4 = arith.constant 0.000000e+00 : f32
    %11 = vector.shape_cast %9 : vector<1x128xi1> to vector<1x128xi1>
    %12 = vector.broadcast %11 : vector<1x128xi1> to vector<32x128xi1>
    %13 = vector.broadcast %cst_4 : f32 to vector<32x128xf32>
    %14 = arith.select %12, %13, %10 : vector<32x128xi1>, vector<32x128xf32>
    %15 = vector.extract_strided_slice %6 {offsets = [32, 0], sizes = [32, 128], strides = [1, 1]} : vector<96x128xf32> to vector<32x128xf32>
    %16 = arith.addf %14, %15 : vector<32x128xf32>
    %17 = vector.extract_strided_slice %6 {offsets = [64, 0], sizes = [32, 128], strides = [1, 1]} : vector<96x128xf32> to vector<32x128xf32>
    %c127_i32 = arith.constant 127 : i32
    %18 = vector.broadcast %c127_i32 : i32 to vector<1x128xi32>
    %19 = arith.cmpi eq, %0, %18 : vector<1x128xi32>
    %c127_i32_5 = arith.constant 127 : i32
    %20 = tpu.dynamic_rotate %17 by %c127_i32_5 dim 1 : vector<32x128xf32>, i32 -> vector<32x128xf32>
    %cst_6 = arith.constant 0.000000e+00 : f32
    %21 = vector.shape_cast %19 : vector<1x128xi1> to vector<1x128xi1>
    %22 = vector.broadcast %21 : vector<1x128xi1> to vector<32x128xi1>
    %23 = vector.broadcast %cst_6 : f32 to vector<32x128xf32>
    %24 = arith.select %22, %23, %20 : vector<32x128xi1>, vector<32x128xf32>
    %25 = arith.addf %16, %24 : vector<32x128xf32>
    %c0_7 = arith.constant 0 : index
    %c0_8 = arith.constant 0 : index
    %26 = vector.load %arg3[%c0_7, %c0_8] : memref<32x1xf32, #tpu.memory_space<vmem>>, vector<32x1xf32>
    %27 = vector.broadcast %26 : vector<32x1xf32> to vector<32x128xf32>
    %28 = arith.addf %25, %27 : vector<32x128xf32>
    %cst_9 = arith.constant 0.000000e+00 : f32
    %29 = vector.shape_cast %2 : vector<1x128xi1> to vector<1x128xi1>
    %30 = vector.broadcast %29 : vector<1x128xi1> to vector<32x128xi1>
    %31 = vector.broadcast %cst_9 : f32 to vector<32x128xf32>
    %32 = arith.select %30, %28, %31 : vector<32x128xi1>, vector<32x128xf32>
    %cst_10 = arith.constant 0.000000e+00 : f32
    %33 = vector.broadcast %cst_10 : f32 to vector<32x128xf32>
    %34 = arith.maximumf %32, %33 : vector<32x128xf32>
    %c0_11 = arith.constant 0 : index
    %c0_12 = arith.constant 0 : index
    %c0_13 = arith.constant 0 : index
    %35 = vector.load %arg4[%c0_11, %c0_12, %c0_13] : memref<2x24x32xf32, #tpu.memory_space<vmem>>, vector<1x24x32xf32>
    %36 = vector.shape_cast %35 : vector<1x24x32xf32> to vector<24x32xf32>
    %cst_14 = arith.constant dense<0.000000e+00> : vector<24x128xf32>
    %37 = tpu.matmul %36, %34, %cst_14 {dimension_numbers = #tpu.dot_dimension_numbers<[1], [0], [0], [1], [0, 0, 1, 1], [], []>} : vector<24x32xf32>, vector<32x128xf32>, vector<24x128xf32> -> vector<24x128xf32>
    %38 = vector.extract_strided_slice %37 {offsets = [0, 0], sizes = [8, 128], strides = [1, 1]} : vector<24x128xf32> to vector<8x128xf32>
    %c0_i32_15 = arith.constant 0 : i32
    %39 = vector.broadcast %c0_i32_15 : i32 to vector<1x128xi32>
    %40 = arith.cmpi eq, %0, %39 : vector<1x128xi32>
    %c1_i32_16 = arith.constant 1 : i32
    %41 = tpu.dynamic_rotate %38 by %c1_i32_16 dim 1 : vector<8x128xf32>, i32 -> vector<8x128xf32>
    %cst_17 = arith.constant 0.000000e+00 : f32
    %42 = vector.shape_cast %40 : vector<1x128xi1> to vector<1x128xi1>
    %43 = vector.broadcast %42 : vector<1x128xi1> to vector<8x128xi1>
    %44 = vector.broadcast %cst_17 : f32 to vector<8x128xf32>
    %45 = arith.select %43, %44, %41 : vector<8x128xi1>, vector<8x128xf32>
    %46 = vector.extract_strided_slice %37 {offsets = [8, 0], sizes = [8, 128], strides = [1, 1]} : vector<24x128xf32> to vector<8x128xf32>
    %47 = arith.addf %45, %46 : vector<8x128xf32>
    %48 = vector.extract_strided_slice %37 {offsets = [16, 0], sizes = [8, 128], strides = [1, 1]} : vector<24x128xf32> to vector<8x128xf32>
    %c127_i32_18 = arith.constant 127 : i32
    %49 = vector.broadcast %c127_i32_18 : i32 to vector<1x128xi32>
    %50 = arith.cmpi eq, %0, %49 : vector<1x128xi32>
    %c127_i32_19 = arith.constant 127 : i32
    %51 = tpu.dynamic_rotate %48 by %c127_i32_19 dim 1 : vector<8x128xf32>, i32 -> vector<8x128xf32>
    %cst_20 = arith.constant 0.000000e+00 : f32
    %52 = vector.shape_cast %50 : vector<1x128xi1> to vector<1x128xi1>
    %53 = vector.broadcast %52 : vector<1x128xi1> to vector<8x128xi1>
    %54 = vector.broadcast %cst_20 : f32 to vector<8x128xf32>
    %55 = arith.select %53, %54, %51 : vector<8x128xi1>, vector<8x128xf32>
    %56 = arith.addf %47, %55 : vector<8x128xf32>
    %cst_21 = arith.constant 0.000000e+00 : f32
    %57 = vector.broadcast %cst_21 : f32 to vector<8x128xf32>
    %58 = arith.maximumf %56, %57 : vector<8x128xf32>
    %c0_22 = arith.constant 0 : index
    %c0_23 = arith.constant 0 : index
    %c0_24 = arith.constant 0 : index
    %59 = vector.load %arg5[%c0_22, %c0_23, %c0_24] : memref<2x32x8xf32, #tpu.memory_space<vmem>>, vector<1x32x8xf32>
    %60 = vector.shape_cast %59 : vector<1x32x8xf32> to vector<32x8xf32>
    %cst_25 = arith.constant dense<0.000000e+00> : vector<32x128xf32>
    %61 = tpu.matmul %60, %58, %cst_25 {dimension_numbers = #tpu.dot_dimension_numbers<[1], [0], [0], [1], [0, 0, 1, 1], [], []>} : vector<32x8xf32>, vector<8x128xf32>, vector<32x128xf32> -> vector<32x128xf32>
    %62 = arith.addf %32, %61 : vector<32x128xf32>
    %cst_26 = arith.constant 0.000000e+00 : f32
    %63 = vector.shape_cast %2 : vector<1x128xi1> to vector<1x128xi1>
    %64 = vector.broadcast %63 : vector<1x128xi1> to vector<32x128xi1>
    %65 = vector.broadcast %cst_26 : f32 to vector<32x128xf32>
    %66 = arith.select %64, %62, %65 : vector<32x128xi1>, vector<32x128xf32>
    %cst_27 = arith.constant 0.000000e+00 : f32
    %67 = vector.broadcast %cst_27 : f32 to vector<32x128xf32>
    %68 = arith.maximumf %66, %67 : vector<32x128xf32>
    %c1 = arith.constant 1 : index
    %c0_28 = arith.constant 0 : index
    %c0_29 = arith.constant 0 : index
    %69 = vector.load %arg4[%c1, %c0_28, %c0_29] : memref<2x24x32xf32, #tpu.memory_space<vmem>>, vector<1x24x32xf32>
    %70 = vector.shape_cast %69 : vector<1x24x32xf32> to vector<24x32xf32>
    %cst_30 = arith.constant dense<0.000000e+00> : vector<24x128xf32>
    %71 = tpu.matmul %70, %68, %cst_30 {dimension_numbers = #tpu.dot_dimension_numbers<[1], [0], [0], [1], [0, 0, 1, 1], [], []>} : vector<24x32xf32>, vector<32x128xf32>, vector<24x128xf32> -> vector<24x128xf32>
    %72 = vector.extract_strided_slice %71 {offsets = [0, 0], sizes = [8, 128], strides = [1, 1]} : vector<24x128xf32> to vector<8x128xf32>
    %c0_i32_31 = arith.constant 0 : i32
    %73 = vector.broadcast %c0_i32_31 : i32 to vector<1x128xi32>
    %74 = arith.cmpi eq, %0, %73 : vector<1x128xi32>
    %c1_i32_32 = arith.constant 1 : i32
    %75 = tpu.dynamic_rotate %72 by %c1_i32_32 dim 1 : vector<8x128xf32>, i32 -> vector<8x128xf32>
    %cst_33 = arith.constant 0.000000e+00 : f32
    %76 = vector.shape_cast %74 : vector<1x128xi1> to vector<1x128xi1>
    %77 = vector.broadcast %76 : vector<1x128xi1> to vector<8x128xi1>
    %78 = vector.broadcast %cst_33 : f32 to vector<8x128xf32>
    %79 = arith.select %77, %78, %75 : vector<8x128xi1>, vector<8x128xf32>
    %80 = vector.extract_strided_slice %71 {offsets = [8, 0], sizes = [8, 128], strides = [1, 1]} : vector<24x128xf32> to vector<8x128xf32>
    %81 = arith.addf %79, %80 : vector<8x128xf32>
    %82 = vector.extract_strided_slice %71 {offsets = [16, 0], sizes = [8, 128], strides = [1, 1]} : vector<24x128xf32> to vector<8x128xf32>
    %c127_i32_34 = arith.constant 127 : i32
    %83 = vector.broadcast %c127_i32_34 : i32 to vector<1x128xi32>
    %84 = arith.cmpi eq, %0, %83 : vector<1x128xi32>
    %c127_i32_35 = arith.constant 127 : i32
    %85 = tpu.dynamic_rotate %82 by %c127_i32_35 dim 1 : vector<8x128xf32>, i32 -> vector<8x128xf32>
    %cst_36 = arith.constant 0.000000e+00 : f32
    %86 = vector.shape_cast %84 : vector<1x128xi1> to vector<1x128xi1>
    %87 = vector.broadcast %86 : vector<1x128xi1> to vector<8x128xi1>
    %88 = vector.broadcast %cst_36 : f32 to vector<8x128xf32>
    %89 = arith.select %87, %88, %85 : vector<8x128xi1>, vector<8x128xf32>
    %90 = arith.addf %81, %89 : vector<8x128xf32>
    %cst_37 = arith.constant 0.000000e+00 : f32
    %91 = vector.broadcast %cst_37 : f32 to vector<8x128xf32>
    %92 = arith.maximumf %90, %91 : vector<8x128xf32>
    %c1_38 = arith.constant 1 : index
    %c0_39 = arith.constant 0 : index
    %c0_40 = arith.constant 0 : index
    %93 = vector.load %arg5[%c1_38, %c0_39, %c0_40] : memref<2x32x8xf32, #tpu.memory_space<vmem>>, vector<1x32x8xf32>
    %94 = vector.shape_cast %93 : vector<1x32x8xf32> to vector<32x8xf32>
    %cst_41 = arith.constant dense<0.000000e+00> : vector<32x128xf32>
    %95 = tpu.matmul %94, %92, %cst_41 {dimension_numbers = #tpu.dot_dimension_numbers<[1], [0], [0], [1], [0, 0, 1, 1], [], []>} : vector<32x8xf32>, vector<8x128xf32>, vector<32x128xf32> -> vector<32x128xf32>
    %96 = arith.addf %66, %95 : vector<32x128xf32>
    %cst_42 = arith.constant 0.000000e+00 : f32
    %97 = vector.shape_cast %2 : vector<1x128xi1> to vector<1x128xi1>
    %98 = vector.broadcast %97 : vector<1x128xi1> to vector<32x128xi1>
    %99 = vector.broadcast %cst_42 : f32 to vector<32x128xf32>
    %100 = arith.select %98, %96, %99 : vector<32x128xi1>, vector<32x128xf32>
    %cst_43 = arith.constant 0.000000e+00 : f32
    %101 = vector.broadcast %cst_43 : f32 to vector<32x128xf32>
    %102 = arith.maximumf %100, %101 : vector<32x128xf32>
    %c0_44 = arith.constant 0 : index
    %c0_45 = arith.constant 0 : index
    %103 = vector.load %arg6[%c0_44, %c0_45] : memref<64x32xf32, #tpu.memory_space<vmem>>, vector<64x32xf32>
    %cst_46 = arith.constant dense<0.000000e+00> : vector<64x128xf32>
    %104 = tpu.matmul %103, %102, %cst_46 {dimension_numbers = #tpu.dot_dimension_numbers<[1], [0], [0], [1], [0, 0, 1, 1], [], []>} : vector<64x32xf32>, vector<32x128xf32>, vector<64x128xf32> -> vector<64x128xf32>
    %c0_47 = arith.constant 0 : index
    %c0_48 = arith.constant 0 : index
    %105 = vector.load %arg7[%c0_47, %c0_48] : memref<16x1xf32, #tpu.memory_space<vmem>>, vector<16x1xf32>
    %106 = vector.extract_strided_slice %104 {offsets = [16, 0], sizes = [16, 128], strides = [1, 1]} : vector<64x128xf32> to vector<16x128xf32>
    %107 = vector.extract_strided_slice %104 {offsets = [48, 0], sizes = [16, 128], strides = [1, 1]} : vector<64x128xf32> to vector<16x128xf32>
    %c0_i32_49 = arith.constant 0 : i32
    %108 = vector.broadcast %c0_i32_49 : i32 to vector<1x128xi32>
    %109 = arith.cmpi eq, %0, %108 : vector<1x128xi32>
    %c1_i32_50 = arith.constant 1 : i32
    %110 = tpu.dynamic_rotate %107 by %c1_i32_50 dim 1 : vector<16x128xf32>, i32 -> vector<16x128xf32>
    %cst_51 = arith.constant 0.000000e+00 : f32
    %111 = vector.shape_cast %109 : vector<1x128xi1> to vector<1x128xi1>
    %112 = vector.broadcast %111 : vector<1x128xi1> to vector<16x128xi1>
    %113 = vector.broadcast %cst_51 : f32 to vector<16x128xf32>
    %114 = arith.select %112, %113, %110 : vector<16x128xi1>, vector<16x128xf32>
    %115 = arith.addf %106, %114 : vector<16x128xf32>
    %116 = vector.broadcast %105 : vector<16x1xf32> to vector<16x128xf32>
    %117 = arith.addf %115, %116 : vector<16x128xf32>
    %cst_52 = arith.constant 0.000000e+00 : f32
    %118 = vector.broadcast %cst_52 : f32 to vector<16x128xf32>
    %119 = arith.maximumf %117, %118 : vector<16x128xf32>
    %120 = vector.extract_strided_slice %104 {offsets = [0, 0], sizes = [16, 128], strides = [1, 1]} : vector<64x128xf32> to vector<16x128xf32>
    %c127_i32_53 = arith.constant 127 : i32
    %121 = vector.broadcast %c127_i32_53 : i32 to vector<1x128xi32>
    %122 = arith.cmpi eq, %0, %121 : vector<1x128xi32>
    %c127_i32_54 = arith.constant 127 : i32
    %123 = tpu.dynamic_rotate %120 by %c127_i32_54 dim 1 : vector<16x128xf32>, i32 -> vector<16x128xf32>
    %cst_55 = arith.constant 0.000000e+00 : f32
    %124 = vector.shape_cast %122 : vector<1x128xi1> to vector<1x128xi1>
    %125 = vector.broadcast %124 : vector<1x128xi1> to vector<16x128xi1>
    %126 = vector.broadcast %cst_55 : f32 to vector<16x128xf32>
    %127 = arith.select %125, %126, %123 : vector<16x128xi1>, vector<16x128xf32>
    %128 = vector.extract_strided_slice %104 {offsets = [32, 0], sizes = [16, 128], strides = [1, 1]} : vector<64x128xf32> to vector<16x128xf32>
    %129 = arith.addf %127, %128 : vector<16x128xf32>
    %130 = vector.broadcast %105 : vector<16x1xf32> to vector<16x128xf32>
    %131 = arith.addf %129, %130 : vector<16x128xf32>
    %cst_56 = arith.constant 0.000000e+00 : f32
    %132 = vector.broadcast %cst_56 : f32 to vector<16x128xf32>
    %133 = arith.maximumf %131, %132 : vector<16x128xf32>
    %cst_57 = arith.constant 0.000000e+00 : f32
    %134 = vector.shape_cast %2 : vector<1x128xi1> to vector<1x128xi1>
    %135 = vector.broadcast %134 : vector<1x128xi1> to vector<16x128xi1>
    %136 = vector.broadcast %cst_57 : f32 to vector<16x128xf32>
    %137 = arith.select %135, %119, %136 : vector<16x128xi1>, vector<16x128xf32>
    %cst_58 = arith.constant 0.000000e+00 : f32
    %138 = vector.shape_cast %2 : vector<1x128xi1> to vector<1x128xi1>
    %139 = vector.broadcast %138 : vector<1x128xi1> to vector<16x128xi1>
    %140 = vector.broadcast %cst_58 : f32 to vector<16x128xf32>
    %141 = arith.select %139, %133, %140 : vector<16x128xi1>, vector<16x128xf32>
    %c0_59 = arith.constant 0 : index
    %c0_60 = arith.constant 0 : index
    %142 = vector.load %arg8[%c0_59, %c0_60] : memref<8x16xf32, #tpu.memory_space<vmem>>, vector<8x16xf32>
    %cst_61 = arith.constant dense<0.000000e+00> : vector<8x128xf32>
    %143 = tpu.matmul %142, %137, %cst_61 {dimension_numbers = #tpu.dot_dimension_numbers<[1], [0], [0], [1], [0, 0, 1, 1], [], []>} : vector<8x16xf32>, vector<16x128xf32>, vector<8x128xf32> -> vector<8x128xf32>
    %c0_62 = arith.constant 0 : index
    %c0_63 = arith.constant 0 : index
    %144 = vector.load %arg9[%c0_62, %c0_63] : memref<8x16xf32, #tpu.memory_space<vmem>>, vector<8x16xf32>
    %cst_64 = arith.constant dense<0.000000e+00> : vector<8x128xf32>
    %145 = tpu.matmul %144, %141, %cst_64 {dimension_numbers = #tpu.dot_dimension_numbers<[1], [0], [0], [1], [0, 0, 1, 1], [], []>} : vector<8x16xf32>, vector<16x128xf32>, vector<8x128xf32> -> vector<8x128xf32>
    %146 = arith.addf %143, %145 : vector<8x128xf32>
    %147 = tpu.iota {dimensions = array<i32: 0>} : vector<4x128xi32>
    %148 = vector.extract_strided_slice %146 {offsets = [0, 0], sizes = [4, 128], strides = [1, 1]} : vector<8x128xf32> to vector<4x128xf32>
    %c0_i32_65 = arith.constant 0 : i32
    %149 = vector.broadcast %c0_i32_65 : i32 to vector<4x128xi32>
    %150 = arith.cmpi eq, %147, %149 : vector<4x128xi32>
    %151 = vector.extract_strided_slice %146 {offsets = [5, 0], sizes = [1, 128], strides = [1, 1]} : vector<8x128xf32> to vector<1x128xf32>
    %c0_i32_66 = arith.constant 0 : i32
    %152 = vector.broadcast %c0_i32_66 : i32 to vector<1x128xi32>
    %153 = arith.cmpi eq, %0, %152 : vector<1x128xi32>
    %c1_i32_67 = arith.constant 1 : i32
    %154 = tpu.dynamic_rotate %151 by %c1_i32_67 dim 1 : vector<1x128xf32>, i32 -> vector<1x128xf32>
    %cst_68 = arith.constant 0.000000e+00 : f32
    %155 = vector.broadcast %cst_68 : f32 to vector<1x128xf32>
    %156 = arith.select %153, %155, %154 : vector<1x128xi1>, vector<1x128xf32>
    %cst_69 = arith.constant 0.000000e+00 : f32
    %157 = vector.shape_cast %156 : vector<1x128xf32> to vector<1x128xf32>
    %158 = vector.broadcast %157 : vector<1x128xf32> to vector<4x128xf32>
    %159 = vector.broadcast %cst_69 : f32 to vector<4x128xf32>
    %160 = arith.select %150, %158, %159 : vector<4x128xi1>, vector<4x128xf32>
    %161 = arith.addf %148, %160 : vector<4x128xf32>
    %c3_i32 = arith.constant 3 : i32
    %162 = vector.broadcast %c3_i32 : i32 to vector<4x128xi32>
    %163 = arith.cmpi eq, %147, %162 : vector<4x128xi32>
    %164 = vector.extract_strided_slice %146 {offsets = [4, 0], sizes = [1, 128], strides = [1, 1]} : vector<8x128xf32> to vector<1x128xf32>
    %c127_i32_70 = arith.constant 127 : i32
    %165 = vector.broadcast %c127_i32_70 : i32 to vector<1x128xi32>
    %166 = arith.cmpi eq, %0, %165 : vector<1x128xi32>
    %c127_i32_71 = arith.constant 127 : i32
    %167 = tpu.dynamic_rotate %164 by %c127_i32_71 dim 1 : vector<1x128xf32>, i32 -> vector<1x128xf32>
    %cst_72 = arith.constant 0.000000e+00 : f32
    %168 = vector.broadcast %cst_72 : f32 to vector<1x128xf32>
    %169 = arith.select %166, %168, %167 : vector<1x128xi1>, vector<1x128xf32>
    %cst_73 = arith.constant 0.000000e+00 : f32
    %170 = vector.shape_cast %169 : vector<1x128xf32> to vector<1x128xf32>
    %171 = vector.broadcast %170 : vector<1x128xf32> to vector<4x128xf32>
    %172 = vector.broadcast %cst_73 : f32 to vector<4x128xf32>
    %173 = arith.select %163, %171, %172 : vector<4x128xi1>, vector<4x128xf32>
    %174 = arith.addf %161, %173 : vector<4x128xf32>
    %c0_74 = arith.constant 0 : index
    %c0_75 = arith.constant 0 : index
    %175 = vector.load %arg10[%c0_74, %c0_75] : memref<1x1xf32, #tpu.memory_space<vmem>>, vector<1x1xf32>
    %176 = vector.broadcast %175 : vector<1x1xf32> to vector<4x128xf32>
    %177 = arith.addf %174, %176 : vector<4x128xf32>
    %c0_76 = arith.constant 0 : index
    %c0_77 = arith.constant 0 : index
    %c0_78 = arith.constant 0 : index
    %178 = vector.load %arg11[%c0_76, %c0_77, %c0_78] : memref<1x4x128xf32, #tpu.memory_space<vmem>>, vector<1x4x128xf32>
    %179 = vector.shape_cast %178 : vector<1x4x128xf32> to vector<4x128xf32>
    %180 = vector.shape_cast %177 : vector<4x128xf32> to vector<1x4x128xf32>
    tpu.vector_store %arg11[%c0_76, %c0_77, %c0_78], %180 {strides = array<i32>} : memref<1x4x128xf32, #tpu.memory_space<vmem>>, vector<1x4x128xf32>,
    return
  }
  func.func @transform_0(%arg0: i32) -> (i32, i32, i32) {
    %c0_i32 = arith.constant 0 : i32
    %c0_i32_0 = arith.constant 0 : i32
    %c0_i32_1 = arith.constant 0 : i32
    return %arg0, %c0_i32, %c0_i32_0 : i32, i32, i32
  }
  func.func @transform_1(%arg0: i32) -> (i32, i32) {
    %c0_i32 = arith.constant 0 : i32
    %c0_i32_0 = arith.constant 0 : i32
    %c0_i32_1 = arith.constant 0 : i32
    return %c0_i32, %c0_i32_0 : i32, i32
  }
  func.func @transform_2(%arg0: i32) -> (i32, i32) {
    %c0_i32 = arith.constant 0 : i32
    %c0_i32_0 = arith.constant 0 : i32
    %c0_i32_1 = arith.constant 0 : i32
    return %c0_i32, %c0_i32_0 : i32, i32
  }
  func.func @transform_3(%arg0: i32) -> (i32, i32, i32) {
    %c0_i32 = arith.constant 0 : i32
    %c0_i32_0 = arith.constant 0 : i32
    %c0_i32_1 = arith.constant 0 : i32
    %c0_i32_2 = arith.constant 0 : i32
    return %c0_i32, %c0_i32_0, %c0_i32_1 : i32, i32, i32
  }
  func.func @transform_4(%arg0: i32) -> (i32, i32, i32) {
    %c0_i32 = arith.constant 0 : i32
    %c0_i32_0 = arith.constant 0 : i32
    %c0_i32_1 = arith.constant 0 : i32
    %c0_i32_2 = arith.constant 0 : i32
    return %c0_i32, %c0_i32_0, %c0_i32_1 : i32, i32, i32
  }
  func.func @transform_5(%arg0: i32) -> (i32, i32) {
    %c0_i32 = arith.constant 0 : i32
    %c0_i32_0 = arith.constant 0 : i32
    %c0_i32_1 = arith.constant 0 : i32
    return %c0_i32, %c0_i32_0 : i32, i32
  }
  func.func @transform_6(%arg0: i32) -> (i32, i32) {
    %c0_i32 = arith.constant 0 : i32
    %c0_i32_0 = arith.constant 0 : i32
    %c0_i32_1 = arith.constant 0 : i32
    return %c0_i32, %c0_i32_0 : i32, i32
  }
  func.func @transform_7(%arg0: i32) -> (i32, i32) {
    %c0_i32 = arith.constant 0 : i32
    %c0_i32_0 = arith.constant 0 : i32
    %c0_i32_1 = arith.constant 0 : i32
    return %c0_i32, %c0_i32_0 : i32, i32
  }
  func.func @transform_8(%arg0: i32) -> (i32, i32) {
    %c0_i32 = arith.constant 0 : i32
    %c0_i32_0 = arith.constant 0 : i32
    %c0_i32_1 = arith.constant 0 : i32
    return %c0_i32, %c0_i32_0 : i32, i32
  }
  func.func @transform_9(%arg0: i32) -> (i32, i32) {
    %c0_i32 = arith.constant 0 : i32
    %c0_i32_0 = arith.constant 0 : i32
    %c0_i32_1 = arith.constant 0 : i32
    return %c0_i32, %c0_i32_0 : i32, i32
  }
  func.func @transform_10(%arg0: i32) -> (i32, i32, i32) {
    %c0_i32 = arith.constant 0 : i32
    %c0_i32_0 = arith.constant 0 : i32
    %c0_i32_1 = arith.constant 0 : i32
    return %arg0, %c0_i32, %c0_i32_0 : i32, i32, i32
  }
}

</mosaic_0001>

<llo_original>
// kernel: decoder_forward.1
$region0: #{decoder_forward.1}
  #allocation0 [shape = 'u32[]', space=smem, size = 0x4, offset = 0x4, fixed_abs, tag = 'smem constant byte address 0x4 - core index']
  #allocation1 [shape = 'u32[72,128]{1,0:T(1,128)}', space=vmem, size = 0x9000, scoped, tag = 'internal scratch']
  #allocation2 [shape = 'f32[1,1]{1,0:T(1,128)S(1)}', space=vmem, size = 0x200, scoped, tag = 'scoped memory for decoder_forward.1']
  %s0 = inlined_call_operand.vmem [shape: f32[2,16,128], index: 0, kind: input, shape index: {}]
  %s1 = inlined_call_operand.vmem [shape: f32[96,16], index: 1, kind: input, shape index: {}]
  %s2 = inlined_call_operand.vmem [shape: f32[32,1], index: 2, kind: input, shape index: {}]
  %s3 = inlined_call_operand.vmem [shape: f32[2,24,32], index: 3, kind: input, shape index: {}]
  %s4 = inlined_call_operand.vmem [shape: f32[2,32,8], index: 4, kind: input, shape index: {}]
  %s5 = inlined_call_operand.vmem [shape: f32[64,32], index: 5, kind: input, shape index: {}]
  %s6 = inlined_call_operand.vmem [shape: f32[16,1], index: 6, kind: input, shape index: {}]
  %s7 = inlined_call_operand.vmem [shape: f32[8,16], index: 7, kind: input, shape index: {}]
  %s8 = inlined_call_operand.vmem [shape: f32[8,16], index: 8, kind: input, shape index: {}]
  %s9 = inlined_call_operand.<no memory space> [shape: f32[1,1], index: 9, kind: input, shape index: {}]
  %s10 = inlined_call_operand.vmem [shape: f32[2,4,128], index: 10, kind: output, shape index: {}]
  %s11 = sld [smem:[#allocation0]]
  $region73: #{decoder_forward.1} parent=0
    _
  %s13 = ssub.s32 1, %s11
  %s14 = scalar_select 0, %s13, %s11
  %v15 = vstv %s9
  %16 = vst [vmem:[#allocation2] sm:$0x1] %v15
  loop: start=0, step=1, limit=4
  $region2: #{decoder_forward.1} parent=0 // loop_pre_header
    _
  $region3: #{decoder_forward.1} parent=0 // loop_header
    %s18 = sphi 0, %s22
    %p19 = scmp.ge.s32.totalorder %s18, 4
    %s28 = sphi 0, %s30
    %s31 = sphi 0, %s28
    %s32 = sphi 0, %s31
    %s48 = sphi 0, %s32
    %s52 = sphi 0, %s52
    %s54 = sphi 0, %s52
    %s55 = sphi 0, %s54
    %s69 = sphi 0, %s55
    %s73 = sphi 0, %s73
    %s75 = sphi 0, %s73
    %s76 = sphi 0, %s75
    %s90 = sphi 0, %s76
    %s94 = sphi 0, %s94
    %s96 = sphi 0, %s94
    %s97 = sphi 0, %s96
    %s111 = sphi 0, %s97
    %s115 = sphi 0, %s115
    %s117 = sphi 0, %s115
    %s118 = sphi 0, %s117
    %s132 = sphi 0, %s118
    %s136 = sphi 0, %s136
    %s138 = sphi 0, %s136
    %s139 = sphi 0, %s138
    %s153 = sphi 0, %s139
    %s157 = sphi 0, %s157
    %s159 = sphi 0, %s157
    %s160 = sphi 0, %s159
    %s174 = sphi 0, %s160
    %s178 = sphi 0, %s178
    %s180 = sphi 0, %s178
    %s181 = sphi 0, %s180
    %s195 = sphi 0, %s181
    %s199 = sphi 0, %s199
    %s201 = sphi 0, %s199
    %s202 = sphi 0, %s201
    %s216 = sphi 0, %s202
    %s220 = sphi 0, %s220
    %s222 = sphi 0, %s220
    %s223 = sphi 0, %s222
    %s237 = sphi 0, %s223
    %s243 = sphi 0, %s245
    %s246 = sphi 0, %s243
    %s247 = sphi 0, %s246
    %s263 = sphi 0, %s247
  $region4: #{decoder_forward.1} parent=0 // loop_header_branch
    %21 = sbr.rel (%p19) target = $region8
  $region5: #{decoder_forward.1} parent=0 // loop_body
    %s23 = ssub.s32 %s18, 1
    %s24 = ssub.s32 %s18, 2
    %s25 = sadd.s32 %s18, 1
    %s26 = ssub.s32 %s18, %s25
    %p27 = scmp.eq.s32.totalorder %s26, 0
    %s29 = sadd.s32 %s28, 1
    %s30 = scalar_select %p27, %s28, %s29
    %p33 = pneg %p27
    %p34 = scmp.eq.s32.totalorder %s18, 1
    %p35 = por %p33, %p34
    %p36 = scmp.ne.s32.totalorder %s28, %s31
    %p37 = scmp.eq.s32.totalorder %s18, 0
    %p38 = por %p36, %p37
    %p39 = scmp.ne.s32.totalorder %s28, %s31
    %p40 = scmp.eq.s32.totalorder %s23, 1
    %p41 = por %p39, %p40
    %p42 = scmp.ne.s32.totalorder %s31, %s32
    %p43 = scmp.eq.s32.totalorder %s23, 0
    %p44 = por %p42, %p43
    %p45 = scmp.ne.s32.totalorder %s31, %s32
    %p46 = scmp.eq.s32.totalorder %s24, 1
    %p47 = por %p45, %p46
    %p49 = scmp.ne.s32.totalorder %s32, %s48
    %p50 = scmp.eq.s32.totalorder %s24, 0
    %p51 = por %p49, %p50
    %s53 = sadd.s32 %s52, 1
    %p56 = scmp.eq.s32.totalorder %s18, 1
    %p57 = scmp.ne.s32.totalorder %s52, %s54
    %p58 = scmp.eq.s32.totalorder %s18, 0
    %p59 = por %p57, %p58
    %p60 = scmp.ne.s32.totalorder %s52, %s54
    %p61 = scmp.eq.s32.totalorder %s23, 1
    %p62 = por %p60, %p61
    %p63 = scmp.ne.s32.totalorder %s54, %s55
    %p64 = scmp.eq.s32.totalorder %s23, 0
    %p65 = por %p63, %p64
    %p66 = scmp.ne.s32.totalorder %s54, %s55
    %p67 = scmp.eq.s32.totalorder %s24, 1
    %p68 = por %p66, %p67
    %p70 = scmp.ne.s32.totalorder %s55, %s69
    %p71 = scmp.eq.s32.totalorder %s24, 0
    %p72 = por %p70, %p71
    %s74 = sadd.s32 %s73, 1
    %p77 = scmp.eq.s32.totalorder %s18, 1
    %p78 = scmp.ne.s32.totalorder %s73, %s75
    %p79 = scmp.eq.s32.totalorder %s18, 0
    %p80 = por %p78, %p79
    %p81 = scmp.ne.s32.totalorder %s73, %s75
    %p82 = scmp.eq.s32.totalorder %s23, 1
    %p83 = por %p81, %p82
    %p84 = scmp.ne.s32.totalorder %s75, %s76
    %p85 = scmp.eq.s32.totalorder %s23, 0
    %p86 = por %p84, %p85
    %p87 = scmp.ne.s32.totalorder %s75, %s76
    %p88 = scmp.eq.s32.totalorder %s24, 1
    %p89 = por %p87, %p88
    %p91 = scmp.ne.s32.totalorder %s76, %s90
    %p92 = scmp.eq.s32.totalorder %s24, 0
    %p93 = por %p91, %p92
    %s95 = sadd.s32 %s94, 1
    %p98 = scmp.eq.s32.totalorder %s18, 1
    %p99 = scmp.ne.s32.totalorder %s94, %s96
    %p100 = scmp.eq.s32.totalorder %s18, 0
    %p101 = por %p99, %p100
    %p102 = scmp.ne.s32.totalorder %s94, %s96
    %p103 = scmp.eq.s32.totalorder %s23, 1
    %p104 = por %p102, %p103
    %p105 = scmp.ne.s32.totalorder %s96, %s97
    %p106 = scmp.eq.s32.totalorder %s23, 0
    %p107 = por %p105, %p106
    %p108 = scmp.ne.s32.totalorder %s96, %s97
    %p109 = scmp.eq.s32.totalorder %s24, 1
    %p110 = por %p108, %p109
    %p112 = scmp.ne.s32.totalorder %s97, %s111
    %p113 = scmp.eq.s32.totalorder %s24, 0
    %p114 = por %p112, %p113
    %s116 = sadd.s32 %s115, 1
    %p119 = scmp.eq.s32.totalorder %s18, 1
    %p120 = scmp.ne.s32.totalorder %s115, %s117
    %p121 = scmp.eq.s32.totalorder %s18, 0
    %p122 = por %p120, %p121
    %p123 = scmp.ne.s32.totalorder %s115, %s117
    %p124 = scmp.eq.s32.totalorder %s23, 1
    %p125 = por %p123, %p124
    %p126 = scmp.ne.s32.totalorder %s117, %s118
    %p127 = scmp.eq.s32.totalorder %s23, 0
    %p128 = por %p126, %p127
    %p129 = scmp.ne.s32.totalorder %s117, %s118
    %p130 = scmp.eq.s32.totalorder %s24, 1
    %p131 = por %p129, %p130
    %p133 = scmp.ne.s32.totalorder %s118, %s132
    %p134 = scmp.eq.s32.totalorder %s24, 0
    %p135 = por %p133, %p134
    %s137 = sadd.s32 %s136, 1
    %p140 = scmp.eq.s32.totalorder %s18, 1
    %p141 = scmp.ne.s32.totalorder %s136, %s138
    %p142 = scmp.eq.s32.totalorder %s18, 0
    %p143 = por %p141, %p142
    %p144 = scmp.ne.s32.totalorder %s136, %s138
    %p145 = scmp.eq.s32.totalorder %s23, 1
    %p146 = por %p144, %p145
    %p147 = scmp.ne.s32.totalorder %s138, %s139
    %p148 = scmp.eq.s32.totalorder %s23, 0
    %p149 = por %p147, %p148
    %p150 = scmp.ne.s32.totalorder %s138, %s139
    %p151 = scmp.eq.s32.totalorder %s24, 1
    %p152 = por %p150, %p151
    %p154 = scmp.ne.s32.totalorder %s139, %s153
    %p155 = scmp.eq.s32.totalorder %s24, 0
    %p156 = por %p154, %p155
    %s158 = sadd.s32 %s157, 1
    %p161 = scmp.eq.s32.totalorder %s18, 1
    %p162 = scmp.ne.s32.totalorder %s157, %s159
    %p163 = scmp.eq.s32.totalorder %s18, 0
    %p164 = por %p162, %p163
    %p165 = scmp.ne.s32.totalorder %s157, %s159
    %p166 = scmp.eq.s32.totalorder %s23, 1
    %p167 = por %p165, %p166
    %p168 = scmp.ne.s32.totalorder %s159, %s160
    %p169 = scmp.eq.s32.totalorder %s23, 0
    %p170 = por %p168, %p169
    %p171 = scmp.ne.s32.totalorder %s159, %s160
    %p172 = scmp.eq.s32.totalorder %s24, 1
    %p173 = por %p171, %p172
    %p175 = scmp.ne.s32.totalorder %s160, %s174
    %p176 = scmp.eq.s32.totalorder %s24, 0
    %p177 = por %p175, %p176
    %s179 = sadd.s32 %s178, 1
    %p182 = scmp.eq.s32.totalorder %s18, 1
    %p183 = scmp.ne.s32.totalorder %s178, %s180
    %p184 = scmp.eq.s32.totalorder %s18, 0
    %p185 = por %p183, %p184
    %p186 = scmp.ne.s32.totalorder %s178, %s180
    %p187 = scmp.eq.s32.totalorder %s23, 1
    %p188 = por %p186, %p187
    %p189 = scmp.ne.s32.totalorder %s180, %s181
    %p190 = scmp.eq.s32.totalorder %s23, 0
    %p191 = por %p189, %p190
    %p192 = scmp.ne.s32.totalorder %s180, %s181
    %p193 = scmp.eq.s32.totalorder %s24, 1
    %p194 = por %p192, %p193
    %p196 = scmp.ne.s32.totalorder %s181, %s195
    %p197 = scmp.eq.s32.totalorder %s24, 0
    %p198 = por %p196, %p197
    %s200 = sadd.s32 %s199, 1
    %p203 = scmp.eq.s32.totalorder %s18, 1
    %p204 = scmp.ne.s32.totalorder %s199, %s201
    %p205 = scmp.eq.s32.totalorder %s18, 0
    %p206 = por %p204, %p205
    %p207 = scmp.ne.s32.totalorder %s199, %s201
    %p208 = scmp.eq.s32.totalorder %s23, 1
    %p209 = por %p207, %p208
    %p210 = scmp.ne.s32.totalorder %s201, %s202
    %p211 = scmp.eq.s32.totalorder %s23, 0
    %p212 = por %p210, %p211
    %p213 = scmp.ne.s32.totalorder %s201, %s202
    %p214 = scmp.eq.s32.totalorder %s24, 1
    %p215 = por %p213, %p214
    %p217 = scmp.ne.s32.totalorder %s202, %s216
    %p218 = scmp.eq.s32.totalorder %s24, 0
    %p219 = por %p217, %p218
    %s221 = sadd.s32 %s220, 1
    %p224 = scmp.eq.s32.totalorder %s18, 1
    %p225 = scmp.ne.s32.totalorder %s220, %s222
    %p226 = scmp.eq.s32.totalorder %s18, 0
    %p227 = por %p225, %p226
    %p228 = scmp.ne.s32.totalorder %s220, %s222
    %p229 = scmp.eq.s32.totalorder %s23, 1
    %p230 = por %p228, %p229
    %p231 = scmp.ne.s32.totalorder %s222, %s223
    %p232 = scmp.eq.s32.totalorder %s23, 0
    %p233 = por %p231, %p232
    %p234 = scmp.ne.s32.totalorder %s222, %s223
    %p235 = scmp.eq.s32.totalorder %s24, 1
    %p236 = por %p234, %p235
    %p238 = scmp.ne.s32.totalorder %s223, %s237
    %p239 = scmp.eq.s32.totalorder %s24, 0
    %p240 = por %p238, %p239
    %s241 = ssub.s32 %s18, %s25
    %p242 = scmp.eq.s32.totalorder %s241, 0
    %s244 = sadd.s32 %s243, 1
    %s245 = scalar_select %p242, %s243, %s244
    %p248 = pneg %p242
    %p249 = scmp.eq.s32.totalorder %s18, 1
    %p250 = por %p248, %p249
    %p251 = scmp.ne.s32.totalorder %s243, %s246
    %p252 = scmp.eq.s32.totalorder %s18, 0
    %p253 = por %p251, %p252
    %p254 = scmp.ne.s32.totalorder %s243, %s246
    %p255 = scmp.eq.s32.totalorder %s23, 1
    %p256 = por %p254, %p255
    %p257 = scmp.ne.s32.totalorder %s246, %s247
    %p258 = scmp.eq.s32.totalorder %s23, 0
    %p259 = por %p257, %p258
    %p260 = scmp.ne.s32.totalorder %s246, %s247
    %p261 = scmp.eq.s32.totalorder %s24, 1
    %p262 = por %p260, %p261
    %p264 = scmp.ne.s32.totalorder %s247, %s263
    %p265 = scmp.eq.s32.totalorder %s24, 0
    %p266 = por %p264, %p265
    %p267 = scmp.le.s32.totalorder 1, %s18
    %p268 = scmp.lt.s32.totalorder %s18, 3
    %p269 = pnand %p267, %p268
    %p270 = pneg %p269
    // Predicated region
    $region9: #{decoder_forward.1} parent=5 // pred_check
      _
    $region10: #{decoder_forward.1} parent=5 // pred_check_branch
      %272 = sbr.rel (%p269) target = $region12
    $region11: #{decoder_forward.1} parent=5 // pred_region
      %s273 = ssub.s32 %s18, 1
      // Predicated region
      $region13: #{decoder_forward.1} parent=11 // pred_check
        %p274 = pneg %p65
      $region14: #{decoder_forward.1} parent=11 // pred_check_branch
        %276 = sbr.rel (%p274) target = $region16
      $region15: #{decoder_forward.1} parent=11 // pred_region
        _
      $region16: #{decoder_forward.1} parent=11 // pred_fallthru
        _
      // Predicated region
      $region17: #{decoder_forward.1} parent=11 // pred_check
        %p277 = pneg %p86
      $region18: #{decoder_forward.1} parent=11 // pred_check_branch
        %279 = sbr.rel (%p277) target = $region20
      $region19: #{decoder_forward.1} parent=11 // pred_region
        _
      $region20: #{decoder_forward.1} parent=11 // pred_fallthru
        _
      // Predicated region
      $region21: #{decoder_forward.1} parent=11 // pred_check
        %p280 = pneg %p107
      $region22: #{decoder_forward.1} parent=11 // pred_check_branch
        %282 = sbr.rel (%p280) target = $region24
      $region23: #{decoder_forward.1} parent=11 // pred_region
        _
      $region24: #{decoder_forward.1} parent=11 // pred_fallthru
        _
      // Predicated region
      $region25: #{decoder_forward.1} parent=11 // pred_check
        %p283 = pneg %p128
      $region26: #{decoder_forward.1} parent=11 // pred_check_branch
        %285 = sbr.rel (%p283) target = $region28
      $region27: #{decoder_forward.1} parent=11 // pred_region
        _
      $region28: #{decoder_forward.1} parent=11 // pred_fallthru
        _
      // Predicated region
      $region29: #{decoder_forward.1} parent=11 // pred_check
        %p286 = pneg %p149
      $region30: #{decoder_forward.1} parent=11 // pred_check_branch
        %288 = sbr.rel (%p286) target = $region32
      $region31: #{decoder_forward.1} parent=11 // pred_region
        _
      $region32: #{decoder_forward.1} parent=11 // pred_fallthru
        _
      // Predicated region
      $region33: #{decoder_forward.1} parent=11 // pred_check
        %p289 = pneg %p170
      $region34: #{decoder_forward.1} parent=11 // pred_check_branch
        %291 = sbr.rel (%p289) target = $region36
      $region35: #{decoder_forward.1} parent=11 // pred_region
        _
      $region36: #{decoder_forward.1} parent=11 // pred_fallthru
        _
      // Predicated region
      $region37: #{decoder_forward.1} parent=11 // pred_check
        %p292 = pneg %p191
      $region38: #{decoder_forward.1} parent=11 // pred_check_branch
        %294 = sbr.rel (%p292) target = $region40
      $region39: #{decoder_forward.1} parent=11 // pred_region
        _
      $region40: #{decoder_forward.1} parent=11 // pred_fallthru
        _
      // Predicated region
      $region41: #{decoder_forward.1} parent=11 // pred_check
        %p295 = pneg %p212
      $region42: #{decoder_forward.1} parent=11 // pred_check_branch
        %297 = sbr.rel (%p295) target = $region44
      $region43: #{decoder_forward.1} parent=11 // pred_region
        _
      $region44: #{decoder_forward.1} parent=11 // pred_fallthru
        _
      // Predicated region
      $region45: #{decoder_forward.1} parent=11 // pred_check
        %p298 = pneg %p233
      $region46: #{decoder_forward.1} parent=11 // pred_check_branch
        %300 = sbr.rel (%p298) target = $region48
      $region47: #{decoder_forward.1} parent=11 // pred_region
        _
      $region48: #{decoder_forward.1} parent=11 // pred_fallthru
        _
    $region12: #{decoder_forward.1} parent=5 // pred_fallthru
      _
    %p301 = scmp.lt.s32.totalorder %s18, 2
    // Predicated region
    $region49: #{decoder_forward.1} parent=5 // pred_check
      %p302 = pneg %p301
    $region50: #{decoder_forward.1} parent=5 // pred_check_branch
      %304 = sbr.rel (%p302) target = $region52
    $region51: #{decoder_forward.1} parent=5 // pred_region
      // Predicated region
      $region53: #{decoder_forward.1} parent=51 // pred_check
        %p305 = pneg %p38
      $region54: #{decoder_forward.1} parent=51 // pred_check_branch
        %307 = sbr.rel (%p305) target = $region56
      $region55: #{decoder_forward.1} parent=51 // pred_region
        %p308 = scmp.lt.s32.totalorder %s18, 1
        %s309 = scalar_select %p308, %s18, 1
        %s310 = smul.addr %s309, 2
        %s311 = smul.addr %s310, 8
        %s312 = scalar_lea.vmem %s0, %s311
      $region56: #{decoder_forward.1} parent=51 // pred_fallthru
        _
    $region52: #{decoder_forward.1} parent=5 // pred_fallthru
      _
    %p313 = scmp.le.s32.totalorder 1, %s18
    %p314 = scmp.lt.s32.totalorder %s18, 3
    %p315 = pnand %p313, %p314
    %p316 = pneg %p315
    // Predicated region
    $region57: #{decoder_forward.1} parent=5 // pred_check
      _
    $region58: #{decoder_forward.1} parent=5 // pred_check_branch
      %318 = sbr.rel (%p315) target = $region60
    $region59: #{decoder_forward.1} parent=5 // pred_region
      %s319 = ssub.s32 %s18, 1
      %p320 = scmp.lt.s32.totalorder %s23, 1
      %s321 = scalar_select %p320, %s23, 1
      %s322 = smul.addr %s321, 2
      %s323 = smul.addr %s322, 8
      %s324 = scalar_lea.vmem %s0, %s323
      %p325 = pneg %p44
      %p326 = pneg %p41
      %p327 = pneg %p65
      %p328 = pneg %p62
      %p329 = pneg %p86
      %p330 = pneg %p83
      %p331 = pneg %p107
      %p332 = pneg %p104
      %p333 = pneg %p128
      %p334 = pneg %p125
      %p335 = pneg %p149
      %p336 = pneg %p146
      %p337 = pneg %p170
      %p338 = pneg %p167
      %p339 = pneg %p191
      %p340 = pneg %p188
      %p341 = pneg %p212
      %p342 = pneg %p209
      %p343 = pneg %p233
      %p344 = pneg %p230
      %p345 = pneg %p259
      %p346 = pneg %p256
      %p347 = scmp.lt.s32.totalorder %s23, 1
      %s348 = scalar_select %p347, %s23, 1
      %s349 = smul.addr %s348, 4
      %s350 = scalar_lea.vmem %s10, %s349
      %p351 = scmp.lt.s32.totalorder %s23, 1
      %s352 = scalar_select %p351, %s23, 1
      %s353 = smul.addr %s352, 2
      %s354 = smul.addr %s353, 8
      %s355 = scalar_lea.vmem %s0, %s354
      %p356 = scmp.lt.s32.totalorder %s23, 1
      %s357 = scalar_select %p356, %s23, 1
      %s358 = smul.addr %s357, 4
      %s359 = scalar_lea.vmem %s10, %s358
      %v360 = vlaneseq
      %v361 = vand.u32 %v360, 127
      %vm362 = vcmp.lt.s32.totalorder %v361, 40
      %v363 = vld [vmem:[%s355] sm:$0xff]
      %v364 = vld [vmem:[%s355 + $0x8] sm:$0xff]
      %v365 = vld [vmem:[%s1] sm:$0xff]
      %v366 = vld [vmem:[%s1 + $0x8] sm:$0xff]
      %v367 = vld [vmem:[%s1 + $0x10] sm:$0xff]
      %v368 = vld [vmem:[%s1 + $0x18] sm:$0xff]
      %v369 = vld [vmem:[%s1 + $0x20] sm:$0xff]
      %v370 = vld [vmem:[%s1 + $0x28] sm:$0xff]
      %v371 = vld [vmem:[%s1 + $0x30] sm:$0xff]
      %v372 = vld [vmem:[%s1 + $0x38] sm:$0xff]
      %v373 = vld [vmem:[%s1 + $0x40] sm:$0xff]
      %v374 = vld [vmem:[%s1 + $0x48] sm:$0xff]
      %v375 = vld [vmem:[%s1 + $0x50] sm:$0xff]
      %v376 = vld [vmem:[%s1 + $0x58] sm:$0xff]
      %vm377 = vcmask 130048
      %v379 = vsel %vm377, %v365, 0
      %v382 = vsel %vm377, %v366, 0
      %v385 = vsel %vm377, %v367, 0
      %v388 = vsel %vm377, %v368, 0
      %v391 = vsel %vm377, %v369, 0
      %v394 = vsel %vm377, %v370, 0
      %v397 = vsel %vm377, %v371, 0
      %v400 = vsel %vm377, %v372, 0
      %v403 = vsel %vm377, %v373, 0
      %v406 = vsel %vm377, %v374, 0
      %v409 = vsel %vm377, %v375, 0
      %v412 = vsel %vm377, %v376, 0
      %414 = vmatpush.msra.mxu0 0.0
      %415 = vmatpush.msra.mxu0 0.0
      %416 = vmatpush.msra.mxu0 0.0
      %417 = vmatpush.msra.mxu0 0.0
      %418 = vmatpush.msra.mxu0 0.0
      %419 = vmatpush.msra.mxu0 0.0
      %420 = vmatpush.msra.mxu0 0.0
      %421 = vmatpush.msra.mxu0 0.0
      %422 = vmatpush.msra.mxu0 0.0
      %423 = vmatpush.msra.mxu0 0.0
      %424 = vmatpush.msra.mxu0 0.0
      %425 = vmatpush.msra.mxu0 0.0
      %426 = vmatpush.msra.mxu0 0.0
      %427 = vmatpush.msra.mxu0 0.0
      %428 = vmatpush.msra.mxu0 %v364
      %429 = vmatpush.msra.mxu0 %v363
      %430 = vmatmul.f32.gmra.mxu0 %v379
      %v431 = vpop.f32.mrf.mxu0
      %v432 = vadd.f32 0.0, %v431
      %433 = vmatmul.f32.gmra.mxu0 %v382
      %v434 = vpop.f32.mrf.mxu0
      %v435 = vadd.f32 0.0, %v434
      %436 = vmatmul.f32.gmra.mxu0 %v385
      %v437 = vpop.f32.mrf.mxu0
      %v438 = vadd.f32 0.0, %v437
      %439 = vmatmul.f32.gmra.mxu0 %v388
      %v440 = vpop.f32.mrf.mxu0
      %v441 = vadd.f32 0.0, %v440
      %442 = vmatmul.f32.gmra.mxu0 %v391
      %v443 = vpop.f32.mrf.mxu0
      %v444 = vadd.f32 0.0, %v443
      %445 = vmatmul.f32.gmra.mxu0 %v394
      %v446 = vpop.f32.mrf.mxu0
      %v447 = vadd.f32 0.0, %v446
      %448 = vmatmul.f32.gmra.mxu0 %v397
      %v449 = vpop.f32.mrf.mxu0
      %v450 = vadd.f32 0.0, %v449
      %451 = vmatmul.f32.gmra.mxu0 %v400
      %v452 = vpop.f32.mrf.mxu0
      %v453 = vadd.f32 0.0, %v452
      %454 = vmatmul.f32.gmra.mxu0 %v403
      %v455 = vpop.f32.mrf.mxu0
      %v456 = vadd.f32 0.0, %v455
      %457 = vmatmul.f32.gmra.mxu0 %v406
      %v458 = vpop.f32.mrf.mxu0
      %v459 = vadd.f32 0.0, %v458
      %460 = vmatmul.f32.gmra.mxu0 %v409
      %v461 = vpop.f32.mrf.mxu0
      %v462 = vadd.f32 0.0, %v461
      %463 = vmatmul.f32.gmra.mxu0 %v412
      %v464 = vpop.f32.mrf.mxu0
      %v465 = vadd.f32 0.0, %v464
      %466 = vdwg.mxu0
      %vm467 = vcmp.eq.s32.totalorder %v361, 0
      %468 = vrot.lane.b32.xlu0 %v432, 1
      %v469 = vpop.permute.xlu0 %468
      %470 = vrot.lane.b32.xlu0 %v435, 1
      %v471 = vpop.permute.xlu0 %470
      %472 = vrot.lane.b32.xlu0 %v438, 1
      %v473 = vpop.permute.xlu0 %472
      %474 = vrot.lane.b32.xlu0 %v441, 1
      %v475 = vpop.permute.xlu0 %474
      %v476 = vsel %vm467, 1, 0
      %vm477 = vcmp.eq.s32.totalorder %v476, 1
      %v478 = vsel %vm477, 0.0, %v469
      %v479 = vsel %vm477, 0.0, %v471
      %v480 = vsel %vm477, 0.0, %v473
      %v481 = vsel %vm477, 0.0, %v475
      %v482 = vadd.f32 %v478, %v444
      %v483 = vadd.f32 %v479, %v447
      %v484 = vadd.f32 %v480, %v450
      %v485 = vadd.f32 %v481, %v453
      %vm486 = vcmp.eq.s32.totalorder %v361, 127
      %487 = vrot.lane.b32.xlu0 %v456, 127
      %v488 = vpop.permute.xlu0 %487
      %489 = vrot.lane.b32.xlu0 %v459, 127
      %v490 = vpop.permute.xlu0 %489
      %491 = vrot.lane.b32.xlu0 %v462, 127
      %v492 = vpop.permute.xlu0 %491
      %493 = vrot.lane.b32.xlu0 %v465, 127
      %v494 = vpop.permute.xlu0 %493
      %v495 = vsel %vm486, 1, 0
      %vm496 = vcmp.eq.s32.totalorder %v495, 1
      %v497 = vsel %vm496, 0.0, %v488
      %v498 = vsel %vm496, 0.0, %v490
      %v499 = vsel %vm496, 0.0, %v492
      %v500 = vsel %vm496, 0.0, %v494
      %v501 = vadd.f32 %v482, %v497
      %v502 = vadd.f32 %v483, %v498
      %v503 = vadd.f32 %v484, %v499
      %v504 = vadd.f32 %v485, %v500
      %v505 = vld [vmem:[%s2] sm:$0xff]
      %v506 = vld [vmem:[%s2 + $0x8] sm:$0xff]
      %v507 = vld [vmem:[%s2 + $0x10] sm:$0xff]
      %v508 = vld [vmem:[%s2 + $0x18] sm:$0xff]
      %510 = vset.pattern.permute.xlu0 0
      %511 = vperm.xlu0 %510, %v505
      %v512 = vpop.permute.xlu0 %511
      %515 = vset.pattern.permute.xlu0 0
      %516 = vperm.xlu0 %515, %v506
      %v517 = vpop.permute.xlu0 %516
      %520 = vset.pattern.permute.xlu0 0
      %521 = vperm.xlu0 %520, %v507
      %v522 = vpop.permute.xlu0 %521
      %525 = vset.pattern.permute.xlu0 0
      %526 = vperm.xlu0 %525, %v508
      %v527 = vpop.permute.xlu0 %526
      %v529 = vadd.f32 %v501, %v512
      %v530 = vadd.f32 %v502, %v517
      %v531 = vadd.f32 %v503, %v522
      %v532 = vadd.f32 %v504, %v527
      %v533 = vsel %vm362, 1, 0
      %vm534 = vcmp.eq.s32.totalorder %v533, 1
      %v535 = vsel %vm534, %v529, 0.0
      %v536 = vsel %vm534, %v530, 0.0
      %v537 = vsel %vm534, %v531, 0.0
      %v538 = vsel %vm534, %v532, 0.0
      %v539 = vmax.f32 %v535, 0.0
      %v540 = vmax.f32 %v536, 0.0
      %v541 = vmax.f32 %v537, 0.0
      %v542 = vmax.f32 %v538, 0.0
      %v543 = vld [vmem:[%s3] sm:$0xff]
      %v544 = vld [vmem:[%s3 + $0x8] sm:$0xff]
      %v545 = vld [vmem:[%s3 + $0x10] sm:$0xff]
      %vm546 = vcmask 261120
      %v548 = vsel %vm546, %v543, 0
      %v551 = vsel %vm546, %v544, 0
      %v554 = vsel %vm546, %v545, 0
      %556 = vmatpush.msra.mxu0 0.0
      %557 = vmatpush.msra.mxu0 0.0
      %558 = vmatpush.msra.mxu0 0.0
      %559 = vmatpush.msra.mxu0 0.0
      %560 = vmatpush.msra.mxu0 0.0
      %561 = vmatpush.msra.mxu0 0.0
      %562 = vmatpush.msra.mxu0 0.0
      %563 = vmatpush.msra.mxu0 0.0
      %564 = vmatpush.msra.mxu0 0.0
      %565 = vmatpush.msra.mxu0 0.0
      %566 = vmatpush.msra.mxu0 0.0
      %567 = vmatpush.msra.mxu0 0.0
      %568 = vmatpush.msra.mxu0 %v542
      %569 = vmatpush.msra.mxu0 %v541
      %570 = vmatpush.msra.mxu0 %v540
      %571 = vmatpush.msra.mxu0 %v539
      %572 = vmatmul.f32.gmra.mxu0 %v548
      %v573 = vpop.f32.mrf.mxu0
      %v574 = vadd.f32 0.0, %v573
      %575 = vmatmul.f32.gmra.mxu0 %v551
      %v576 = vpop.f32.mrf.mxu0
      %v577 = vadd.f32 0.0, %v576
      %578 = vmatmul.f32.gmra.mxu0 %v554
      %v579 = vpop.f32.mrf.mxu0
      %v580 = vadd.f32 0.0, %v579
      %581 = vdwg.mxu0
      %582 = vrot.lane.b32.xlu0 %v574, 1
      %v583 = vpop.permute.xlu0 %582
      %v584 = vsel %vm477, 0.0, %v583
      %v585 = vadd.f32 %v584, %v577
      %586 = vrot.lane.b32.xlu0 %v580, 127
      %v587 = vpop.permute.xlu0 %586
      %v588 = vsel %vm496, 0.0, %v587
      %v589 = vadd.f32 %v585, %v588
      %v590 = vmax.f32 %v589, 0.0
      %v591 = vld [vmem:[%s4] sm:$0xff]
      %v592 = vld [vmem:[%s4 + $0x8] sm:$0xff]
      %v593 = vld [vmem:[%s4 + $0x10] sm:$0xff]
      %v594 = vld [vmem:[%s4 + $0x18] sm:$0xff]
      %vm595 = vcmask 64512
      %v597 = vsel %vm595, %v591, 0
      %v600 = vsel %vm595, %v592, 0
      %v603 = vsel %vm595, %v593, 0
      %v606 = vsel %vm595, %v594, 0
      %608 = vmatpush.msra.mxu0 0.0
      %609 = vmatpush.msra.mxu0 0.0
      %610 = vmatpush.msra.mxu0 0.0
      %611 = vmatpush.msra.mxu0 0.0
      %612 = vmatpush.msra.mxu0 0.0
      %613 = vmatpush.msra.mxu0 0.0
      %614 = vmatpush.msra.mxu0 0.0
      %615 = vmatpush.msra.mxu0 0.0
      %616 = vmatpush.msra.mxu0 0.0
      %617 = vmatpush.msra.mxu0 0.0
      %618 = vmatpush.msra.mxu0 0.0
      %619 = vmatpush.msra.mxu0 0.0
      %620 = vmatpush.msra.mxu0 0.0
      %621 = vmatpush.msra.mxu0 0.0
      %622 = vmatpush.msra.mxu0 0.0
      %623 = vmatpush.msra.mxu0 %v590
      %624 = vmatmul.f32.gmra.mxu0 %v597
      %v625 = vpop.f32.mrf.mxu0
      %v626 = vadd.f32 0.0, %v625
      %627 = vmatmul.f32.gmra.mxu0 %v600
      %v628 = vpop.f32.mrf.mxu0
      %v629 = vadd.f32 0.0, %v628
      %630 = vmatmul.f32.gmra.mxu0 %v603
      %v631 = vpop.f32.mrf.mxu0
      %v632 = vadd.f32 0.0, %v631
      %633 = vmatmul.f32.gmra.mxu0 %v606
      %v634 = vpop.f32.mrf.mxu0
      %v635 = vadd.f32 0.0, %v634
      %636 = vdwg.mxu0
      %v637 = vadd.f32 %v535, %v626
      %v638 = vadd.f32 %v536, %v629
      %v639 = vadd.f32 %v537, %v632
      %v640 = vadd.f32 %v538, %v635
      %v641 = vsel %vm534, %v637, 0.0
      %v642 = vsel %vm534, %v638, 0.0
      %v643 = vsel %vm534, %v639, 0.0
      %v644 = vsel %vm534, %v640, 0.0
      %v645 = vmax.f32 %v641, 0.0
      %v646 = vmax.f32 %v642, 0.0
      %v647 = vmax.f32 %v643, 0.0
      %v648 = vmax.f32 %v644, 0.0
      %s649 = scalar_lea.vmem %s3, 24
      %v650 = vld [vmem:[%s649] sm:$0xff]
      %v651 = vld [vmem:[%s649 + $0x8] sm:$0xff]
      %v652 = vld [vmem:[%s649 + $0x10] sm:$0xff]
      %v654 = vsel %vm546, %v650, 0
      %v657 = vsel %vm546, %v651, 0
      %v660 = vsel %vm546, %v652, 0
      %662 = vmatpush.msra.mxu0 0.0
      %663 = vmatpush.msra.mxu0 0.0
      %664 = vmatpush.msra.mxu0 0.0
      %665 = vmatpush.msra.mxu0 0.0
      %666 = vmatpush.msra.mxu0 0.0
      %667 = vmatpush.msra.mxu0 0.0
      %668 = vmatpush.msra.mxu0 0.0
      %669 = vmatpush.msra.mxu0 0.0
      %670 = vmatpush.msra.mxu0 0.0
      %671 = vmatpush.msra.mxu0 0.0
      %672 = vmatpush.msra.mxu0 0.0
      %673 = vmatpush.msra.mxu0 0.0
      %674 = vmatpush.msra.mxu0 %v648
      %675 = vmatpush.msra.mxu0 %v647
      %676 = vmatpush.msra.mxu0 %v646
      %677 = vmatpush.msra.mxu0 %v645
      %678 = vmatmul.f32.gmra.mxu0 %v654
      %v679 = vpop.f32.mrf.mxu0
      %v680 = vadd.f32 0.0, %v679
      %681 = vmatmul.f32.gmra.mxu0 %v657
      %v682 = vpop.f32.mrf.mxu0
      %v683 = vadd.f32 0.0, %v682
      %684 = vmatmul.f32.gmra.mxu0 %v660
      %v685 = vpop.f32.mrf.mxu0
      %v686 = vadd.f32 0.0, %v685
      %687 = vdwg.mxu0
      %688 = vrot.lane.b32.xlu0 %v680, 1
      %v689 = vpop.permute.xlu0 %688
      %v690 = vsel %vm477, 0.0, %v689
      %v691 = vadd.f32 %v690, %v683
      %692 = vrot.lane.b32.xlu0 %v686, 127
      %v693 = vpop.permute.xlu0 %692
      %v694 = vsel %vm496, 0.0, %v693
      %v695 = vadd.f32 %v691, %v694
      %v696 = vmax.f32 %v695, 0.0
      %s697 = scalar_lea.vmem %s4, 32
      %v698 = vld [vmem:[%s697] sm:$0xff]
      %v699 = vld [vmem:[%s697 + $0x8] sm:$0xff]
      %v700 = vld [vmem:[%s697 + $0x10] sm:$0xff]
      %v701 = vld [vmem:[%s697 + $0x18] sm:$0xff]
      %v703 = vsel %vm595, %v698, 0
      %v706 = vsel %vm595, %v699, 0
      %v709 = vsel %vm595, %v700, 0
      %v712 = vsel %vm595, %v701, 0
      %714 = vmatpush.msra.mxu0 0.0
      %715 = vmatpush.msra.mxu0 0.0
      %716 = vmatpush.msra.mxu0 0.0
      %717 = vmatpush.msra.mxu0 0.0
      %718 = vmatpush.msra.mxu0 0.0
      %719 = vmatpush.msra.mxu0 0.0
      %720 = vmatpush.msra.mxu0 0.0
      %721 = vmatpush.msra.mxu0 0.0
      %722 = vmatpush.msra.mxu0 0.0
      %723 = vmatpush.msra.mxu0 0.0
      %724 = vmatpush.msra.mxu0 0.0
      %725 = vmatpush.msra.mxu0 0.0
      %726 = vmatpush.msra.mxu0 0.0
      %727 = vmatpush.msra.mxu0 0.0
      %728 = vmatpush.msra.mxu0 0.0
      %729 = vmatpush.msra.mxu0 %v696
      %730 = vmatmul.f32.gmra.mxu0 %v703
      %v731 = vpop.f32.mrf.mxu0
      %v732 = vadd.f32 0.0, %v731
      %733 = vmatmul.f32.gmra.mxu0 %v706
      %v734 = vpop.f32.mrf.mxu0
      %v735 = vadd.f32 0.0, %v734
      %736 = vmatmul.f32.gmra.mxu0 %v709
      %v737 = vpop.f32.mrf.mxu0
      %v738 = vadd.f32 0.0, %v737
      %739 = vmatmul.f32.gmra.mxu0 %v712
      %v740 = vpop.f32.mrf.mxu0
      %v741 = vadd.f32 0.0, %v740
      %742 = vdwg.mxu0
      %v743 = vadd.f32 %v641, %v732
      %v744 = vadd.f32 %v642, %v735
      %v745 = vadd.f32 %v643, %v738
      %v746 = vadd.f32 %v644, %v741
      %v747 = vsel %vm534, %v743, 0.0
      %v748 = vsel %vm534, %v744, 0.0
      %v749 = vsel %vm534, %v745, 0.0
      %v750 = vsel %vm534, %v746, 0.0
      %v751 = vmax.f32 %v747, 0.0
      %v752 = vmax.f32 %v748, 0.0
      %v753 = vmax.f32 %v749, 0.0
      %v754 = vmax.f32 %v750, 0.0
      %v755 = vld [vmem:[%s5] sm:$0xff]
      %v756 = vld [vmem:[%s5 + $0x8] sm:$0xff]
      %v757 = vld [vmem:[%s5 + $0x10] sm:$0xff]
      %v758 = vld [vmem:[%s5 + $0x18] sm:$0xff]
      %v759 = vld [vmem:[%s5 + $0x20] sm:$0xff]
      %v760 = vld [vmem:[%s5 + $0x28] sm:$0xff]
      %v761 = vld [vmem:[%s5 + $0x30] sm:$0xff]
      %v762 = vld [vmem:[%s5 + $0x38] sm:$0xff]
      %v764 = vsel %vm546, %v755, 0
      %v767 = vsel %vm546, %v756, 0
      %v770 = vsel %vm546, %v757, 0
      %v773 = vsel %vm546, %v758, 0
      %v776 = vsel %vm546, %v759, 0
      %v779 = vsel %vm546, %v760, 0
      %v782 = vsel %vm546, %v761, 0
      %v785 = vsel %vm546, %v762, 0
      %787 = vmatpush.msra.mxu0 0.0
      %788 = vmatpush.msra.mxu0 0.0
      %789 = vmatpush.msra.mxu0 0.0
      %790 = vmatpush.msra.mxu0 0.0
      %791 = vmatpush.msra.mxu0 0.0
      %792 = vmatpush.msra.mxu0 0.0
      %793 = vmatpush.msra.mxu0 0.0
      %794 = vmatpush.msra.mxu0 0.0
      %795 = vmatpush.msra.mxu0 0.0
      %796 = vmatpush.msra.mxu0 0.0
      %797 = vmatpush.msra.mxu0 0.0
      %798 = vmatpush.msra.mxu0 0.0
      %799 = vmatpush.msra.mxu0 %v754
      %800 = vmatpush.msra.mxu0 %v753
      %801 = vmatpush.msra.mxu0 %v752
      %802 = vmatpush.msra.mxu0 %v751
      %803 = vmatmul.f32.gmra.mxu0 %v764
      %v804 = vpop.f32.mrf.mxu0
      %v805 = vadd.f32 0.0, %v804
      %806 = vmatmul.f32.gmra.mxu0 %v767
      %v807 = vpop.f32.mrf.mxu0
      %v808 = vadd.f32 0.0, %v807
      %809 = vmatmul.f32.gmra.mxu0 %v770
      %v810 = vpop.f32.mrf.mxu0
      %v811 = vadd.f32 0.0, %v810
      %812 = vmatmul.f32.gmra.mxu0 %v773
      %v813 = vpop.f32.mrf.mxu0
      %v814 = vadd.f32 0.0, %v813
      %815 = vmatmul.f32.gmra.mxu0 %v776
      %v816 = vpop.f32.mrf.mxu0
      %v817 = vadd.f32 0.0, %v816
      %818 = vmatmul.f32.gmra.mxu0 %v779
      %v819 = vpop.f32.mrf.mxu0
      %v820 = vadd.f32 0.0, %v819
      %821 = vmatmul.f32.gmra.mxu0 %v782
      %v822 = vpop.f32.mrf.mxu0
      %v823 = vadd.f32 0.0, %v822
      %824 = vmatmul.f32.gmra.mxu0 %v785
      %v825 = vpop.f32.mrf.mxu0
      %v826 = vadd.f32 0.0, %v825
      %827 = vdwg.mxu0
      %v828 = vld [vmem:[%s6] sm:$0xff]
      %v829 = vld [vmem:[%s6 + $0x8] sm:$0xff]
      %830 = vrot.lane.b32.xlu0 %v823, 1
      %v831 = vpop.permute.xlu0 %830
      %832 = vrot.lane.b32.xlu0 %v826, 1
      %v833 = vpop.permute.xlu0 %832
      %v834 = vsel %vm477, 0.0, %v831
      %v835 = vsel %vm477, 0.0, %v833
      %v836 = vadd.f32 %v811, %v834
      %v837 = vadd.f32 %v814, %v835
      %839 = vset.pattern.permute.xlu0 0
      %840 = vperm.xlu0 %839, %v828
      %v841 = vpop.permute.xlu0 %840
      %844 = vset.pattern.permute.xlu0 0
      %845 = vperm.xlu0 %844, %v829
      %v846 = vpop.permute.xlu0 %845
      %v848 = vadd.f32 %v836, %v841
      %v849 = vadd.f32 %v837, %v846
      %v850 = vmax.f32 %v848, 0.0
      %v851 = vmax.f32 %v849, 0.0
      %852 = vrot.lane.b32.xlu0 %v805, 127
      %v853 = vpop.permute.xlu0 %852
      %854 = vrot.lane.b32.xlu0 %v808, 127
      %v855 = vpop.permute.xlu0 %854
      %v856 = vsel %vm496, 0.0, %v853
      %v857 = vsel %vm496, 0.0, %v855
      %v858 = vadd.f32 %v856, %v817
      %v859 = vadd.f32 %v857, %v820
      %v860 = vadd.f32 %v858, %v841
      %v861 = vadd.f32 %v859, %v846
      %v862 = vmax.f32 %v860, 0.0
      %v863 = vmax.f32 %v861, 0.0
      %v864 = vsel %vm534, %v850, 0.0
      %v865 = vsel %vm534, %v851, 0.0
      %v866 = vsel %vm534, %v862, 0.0
      %v867 = vsel %vm534, %v863, 0.0
      %v868 = vld [vmem:[%s7] sm:$0xff]
      %v869 = vld [vmem:[%s8] sm:$0xff]
      %v871 = vsel %vm377, %v869, 0
      %873 = vmatpush.msra.mxu0 0.0
      %874 = vmatpush.msra.mxu0 0.0
      %875 = vmatpush.msra.mxu0 0.0
      %876 = vmatpush.msra.mxu0 0.0
      %877 = vmatpush.msra.mxu0 0.0
      %878 = vmatpush.msra.mxu0 0.0
      %879 = vmatpush.msra.mxu0 0.0
      %880 = vmatpush.msra.mxu0 0.0
      %881 = vmatpush.msra.mxu0 0.0
      %882 = vmatpush.msra.mxu0 0.0
      %883 = vmatpush.msra.mxu0 0.0
      %884 = vmatpush.msra.mxu0 0.0
      %885 = vmatpush.msra.mxu0 0.0
      %886 = vmatpush.msra.mxu0 0.0
      %887 = vmatpush.msra.mxu0 %v867
      %888 = vmatpush.msra.mxu0 %v866
      %889 = vmatmul.f32.gmra.mxu0 %v871
      %v890 = vpop.f32.mrf.mxu0
      %v891 = vadd.f32 0.0, %v890
      %892 = vdwg.mxu0
      %v894 = vsel %vm377, %v868, 0
      %896 = vmatpush.msra.mxu0 0.0
      %897 = vmatpush.msra.mxu0 0.0
      %898 = vmatpush.msra.mxu0 0.0
      %899 = vmatpush.msra.mxu0 0.0
      %900 = vmatpush.msra.mxu0 0.0
      %901 = vmatpush.msra.mxu0 0.0
      %902 = vmatpush.msra.mxu0 0.0
      %903 = vmatpush.msra.mxu0 0.0
      %904 = vmatpush.msra.mxu0 0.0
      %905 = vmatpush.msra.mxu0 0.0
      %906 = vmatpush.msra.mxu0 0.0
      %907 = vmatpush.msra.mxu0 0.0
      %908 = vmatpush.msra.mxu0 0.0
      %909 = vmatpush.msra.mxu0 0.0
      %910 = vmatpush.msra.mxu0 %v865
      %911 = vmatpush.msra.mxu0 %v864
      %912 = vmatmul.f32.gmra.mxu0 %v894
      %v913 = vpop.f32.mrf.mxu0
      %v914 = vadd.f32 %v891, %v913
      %915 = vdwg.mxu0
      %v916 = vlaneseq
      %v917 = vshrl.u32 %v916, 7
      %vm918 = vcmp.eq.s32.totalorder %v917, 0
      %v920 = vrot.slane %v914, 5
      %922 = vrot.lane.b32.xlu0 %v920, 1
      %v923 = vpop.permute.xlu0 %922
      %v924 = vsel %vm467, 0.0, %v923
      %v925 = vperm.slane %v924, 0
      %v926 = vsel %vm918, %v925, 0.0
      %v927 = vadd.f32 %v914, %v926
      %vm928 = vcmp.eq.s32.totalorder %v917, 3
      %v929 = vrot.slane %v914, 4
      %931 = vrot.lane.b32.xlu0 %v929, 127
      %v932 = vpop.permute.xlu0 %931
      %v933 = vsel %vm486, 0.0, %v932
      %v934 = vperm.slane %v933, 0
      %v935 = vsel %vm928, %v934, 0.0
      %v936 = vadd.f32 %v927, %v935
      %v937 = vld [vmem:[#allocation2] sm:$0x1]
      %v939 = vperm.slane %v937, 0
      %940 = vset.pattern.permute.xlu0 0
      %941 = vperm.xlu0 %940, %v939
      %v942 = vpop.permute.xlu0 %941
      %v944 = vadd.f32 %v936, %v942
      %945 = vst [vmem:[%s359] sm:$0xf] %v944
      %p946 = scmp.lt.s32.totalorder %s23, 1
      %s947 = scalar_select %p946, %s23, 1
      %s948 = smul.addr %s947, 4
      %s949 = scalar_lea.vmem %s10, %s948
      // Predicated region
      $region61: #{decoder_forward.1} parent=59 // pred_check
        %p950 = pneg %p256
      $region62: #{decoder_forward.1} parent=59 // pred_check_branch
        %952 = sbr.rel (%p950) target = $region64
      $region63: #{decoder_forward.1} parent=59 // pred_region
        _
      $region64: #{decoder_forward.1} parent=59 // pred_fallthru
        _
    $region60: #{decoder_forward.1} parent=5 // pred_fallthru
      _
    %p953 = scmp.le.s32.totalorder 2, %s18
    // Predicated region
    $region65: #{decoder_forward.1} parent=5 // pred_check
      %p954 = pneg %p953
    $region66: #{decoder_forward.1} parent=5 // pred_check_branch
      %956 = sbr.rel (%p954) target = $region68
    $region67: #{decoder_forward.1} parent=5 // pred_region
      %s957 = ssub.s32 %s18, 2
      // Predicated region
      $region69: #{decoder_forward.1} parent=67 // pred_check
        %p958 = pneg %p262
      $region70: #{decoder_forward.1} parent=67 // pred_check_branch
        %960 = sbr.rel (%p958) target = $region72
      $region71: #{decoder_forward.1} parent=67 // pred_region
        %p961 = scmp.lt.s32.totalorder %s24, 1
        %s962 = scalar_select %p961, %s24, 1
        %s963 = smul.addr %s962, 4
        %s964 = scalar_lea.vmem %s10, %s963
      $region72: #{decoder_forward.1} parent=67 // pred_fallthru
        _
    $region68: #{decoder_forward.1} parent=5 // pred_fallthru
      _
  $region6: #{decoder_forward.1} parent=0 // loop_footer
    %s22 = sadd.s32 1, %s18
  $region7: #{decoder_forward.1} parent=0 // loop_footer_branch
    %17 = sbr.rel target = $region3
  $region8: #{decoder_forward.1} parent=0 // loop_exit
    _

</llo_original>
